<compile_context>
chip_gen: v7x
topology: tpu7x:2x2x1
jax: 0.10.0
libtpu: 0.0.40
codegen_flags: <defaults>
</compile_context>

<pallas_src>
import functools

import jax
import jax.numpy as jnp
from jax.experimental import pallas as pl
from jax.experimental.pallas import tpu as pltpu


def _round_up(x, m):
    return (x + m - 1) // m * m


def _actor_critic_kernel(x_ref, p_ref, out_ref, *, ni, hp, r_b1, r_w2, r_b2, r_msk):
    """One fused forward step over a (bm, ni) batch tile.

    p_ref layout (all rows zero-padded, width = hp, a multiple of 128):
      rows [0, ni)            : W1 fused  (cols 0:hidden = critic_w1, hidden:2h = actor_w1)
      row  r_b1               : b1 fused
      rows [r_w2, r_w2 + hp)  : W2 block-diagonal (actor_w2 -> cols 0:no,
                                critic_w2 -> col 2*no)
      row  r_b2               : b2 packed  [actor_b2 | log_std | critic_b2 | 0...]
      row  r_msk              : 1.0 in the std columns, 0 elsewhere
    Output slab columns: [mu (0:no) | std (no:2no) | value (2no) | padding].
    """
    x = x_ref[...]                                   # (bm, ni)

    w1 = p_ref[0:ni, :]                              # (ni, hp)
    b1 = p_ref[r_b1:r_b1 + 1, :]                     # (1, hp)
    w2 = p_ref[r_w2:r_w2 + hp, :]                    # (hp, hp)
    b2 = p_ref[r_b2:r_b2 + 1, :]                     # (1, hp)
    msk = p_ref[r_msk:r_msk + 1, :]                  # (1, hp)

    # Layer 1 (critic + actor fused): h = relu(x @ W1 + b1)   -> (bm, hp)
    h = jnp.maximum(
        jnp.dot(x, w1, preferred_element_type=jnp.float32) + b1, 0.0)

    # Layer 2 (critic + actor fused): lin = h @ W2              -> (bm, hp)
    lin = jnp.dot(h, w2, preferred_element_type=jnp.float32)

    # Bias row: exp() only in the std columns (their matmul result is 0),
    # plain bias elsewhere.  Adding it broadcasts std across the batch,
    # matching log_std.exp().expand_as(mu).
    row = jnp.where(msk != 0.0, jnp.exp(b2), b2)     # (1, hp)

    # Single lane-dense (bm, hp) store.
    out_ref[...] = (lin + row).astype(out_ref.dtype)


def pack_params(params):
    """Pack all ActorCritic parameters into one (rows, HP) f32 buffer."""
    cw1, cb1 = params["critic_w1"], params["critic_b1"]
    cw2, cb2 = params["critic_w2"], params["critic_b2"]
    aw1, ab1 = params["actor_w1"], params["actor_b1"]
    aw2, ab2 = params["actor_w2"], params["actor_b2"]
    log_std = params["log_std"]

    ni, hidden = cw1.shape
    no = aw2.shape[1]

    hp = _round_up(max(2 * hidden, 2 * no + 1), 128)   # fused hidden / slab width
    ni_r = _round_up(ni, 8)
    r_b1 = ni_r
    r_w2 = ni_r + 8
    r_b2 = r_w2 + hp
    r_msk = r_b2 + 8
    rows = r_msk + 8

    p = jnp.zeros((rows, hp), jnp.float32)
    # Fused first-layer weight / bias.
    p = p.at[0:ni, 0:hidden].set(cw1)
    p = p.at[0:ni, hidden:2 * hidden].set(aw1)
    p = p.at[r_b1, 0:hidden].set(cb1[0])
    p = p.at[r_b1, hidden:2 * hidden].set(ab1[0])
    # Block-diagonal second-layer weight: critic -> col 2*no, actor -> cols 0:no.
    p = p.at[r_w2:r_w2 + hidden, 2 * no].set(cw2[:, 0])
    p = p.at[r_w2 + hidden:r_w2 + 2 * hidden, 0:no].set(aw2)
    # Packed second-layer bias: [actor_b2 | log_std | critic_b2 | 0...].
    p = p.at[r_b2, 0:no].set(ab2[0])
    p = p.at[r_b2, no:2 * no].set(log_std[0])
    p = p.at[r_b2, 2 * no].set(cb2[0, 0])
    # Std-column mask.
    p = p.at[r_msk, no:2 * no].set(1.0)

    meta = dict(ni=ni, hp=hp, no=no, r_b1=r_b1, r_w2=r_w2, r_b2=r_b2, r_msk=r_msk)
    return p, meta


def actor_critic_forward(x, packed_params, meta, *, block_batch=256):
    """x: (B, num_inputs) float32.  Returns (mu, std, value)."""
    ni, hp, no = meta["ni"], meta["hp"], meta["no"]
    B = x.shape[0]

    # Batch tiling: block of up to `block_batch` rows (multiple of 8); the
    # grid axis is "parallel" so large batches shard across v7x's two TCs.
    bm = min(_round_up(B, 8), block_batch)
    b_pad = _round_up(B, bm)
    if b_pad != B:
        x = jnp.pad(x, ((0, b_pad - B), (0, 0)))
    grid = (b_pad // bm,)

    kernel = functools.partial(
        _actor_critic_kernel, ni=ni, hp=hp,
        r_b1=meta["r_b1"], r_w2=meta["r_w2"],
        r_b2=meta["r_b2"], r_msk=meta["r_msk"])

    out_bytes = b_pad * hp * 4
    cost = pl.CostEstimate(
        flops=2 * b_pad * ni * hp + 2 * b_pad * hp * hp,
        transcendentals=hp,
        bytes_accessed=x.size * 4 + packed_params.size * 4 + out_bytes)

    slab = pl.pallas_call(
        kernel,
        out_shape=jax.ShapeDtypeStruct((b_pad, hp), jnp.float32),
        grid=grid,
        in_specs=[
            pl.BlockSpec((bm, ni), lambda i: (i, 0)),                 # batch tile
            pl.BlockSpec(packed_params.shape, lambda i: (0, 0)),      # all params, 1 DMA
        ],
        out_specs=pl.BlockSpec((bm, hp), lambda i: (i, 0)),
        compiler_params=pltpu.CompilerParams(
            dimension_semantics=("parallel",)),
        cost_estimate=cost,
    )(x, packed_params)

    mu = slab[:B, 0:no]
    std = slab[:B, no:2 * no]
    value = slab[:B, 2 * no:2 * no + 1]
    return mu, std, value


def init_params(key, num_inputs, num_outputs, hidden_size, std=0.0):
    """Deterministic init mimicking nn.Linear's U(-1/sqrt(fan_in), 1/sqrt(fan_in))."""
    ks = jax.random.split(key, 8)

    def linear(kw, kb, fan_in, fan_out):
        bound = 1.0 / jnp.sqrt(jnp.float32(fan_in))
        w = jax.random.uniform(kw, (fan_in, fan_out), jnp.float32, -bound, bound)
        b = jax.random.uniform(kb, (1, fan_out), jnp.float32, -bound, bound)
        return w, b

    cw1, cb1 = linear(ks[0], ks[1], num_inputs, hidden_size)
    cw2, cb2 = linear(ks[2], ks[3], hidden_size, 1)
    aw1, ab1 = linear(ks[4], ks[5], num_inputs, hidden_size)
    aw2, ab2 = linear(ks[6], ks[7], hidden_size, num_outputs)
    log_std = jnp.ones((1, num_outputs), jnp.float32) * std

    return {
        "critic_w1": cw1, "critic_b1": cb1,
        "critic_w2": cw2, "critic_b2": cb2,
        "actor_w1": aw1, "actor_b1": ab1,
        "actor_w2": aw2, "actor_b2": ab2,
        "log_std": log_std,
    }


if __name__ == "__main__":
    num_inputs, num_outputs, hidden_size = 16, 4, 32
    batch = 8

    key = jax.random.PRNGKey(0)
    k_x, k_p = jax.random.split(key)
    x = jax.random.normal(k_x, (batch, num_inputs), jnp.float32)
    params = init_params(k_p, num_inputs, num_outputs, hidden_size, std=0.0)

    packed, meta = pack_params(params)
    mu, std, value = actor_critic_forward(x, packed, meta)
    jax.block_until_ready((mu, std, value))

    # Pure-JAX reference check (unfused).
    h_c = jnp.maximum(x @ params["critic_w1"] + params["critic_b1"], 0.0)
    value_ref = h_c @ params["critic_w2"] + params["critic_b2"]
    h_a = jnp.maximum(x @ params["actor_w1"] + params["actor_b1"], 0.0)
    mu_ref = h_a @ params["actor_w2"] + params["actor_b2"]
    std_ref = jnp.broadcast_to(jnp.exp(params["log_std"]), mu_ref.shape)

    assert mu.shape == (batch, num_outputs)
    assert std.shape == (batch, num_outputs)
    assert value.shape == (batch, 1)
    assert jnp.allclose(mu, mu_ref, atol=1e-5, rtol=1e-5)
    assert jnp.allclose(std, std_ref, atol=1e-5, rtol=1e-5)
    assert jnp.allclose(value, value_ref, atol=1e-5, rtol=1e-5)

    # TODO(synk): torch.distributions.Normal has no Pallas equivalent; the
    # kernel returns its parameters (mu, std) instead of a distribution object.
    print("KERNEL_OK")
</pallas_src>

<mosaic_0001>
module attributes {stable_mosaic.version = 11 : i64} {
  func.func @_actor_critic_kernel(%arg0: i32, %arg1: memref<8x16xf32, #tpu.memory_space<vmem>>, %arg2: memref<168x128xf32, #tpu.memory_space<vmem>>, %arg3: memref<8x128xf32, #tpu.memory_space<vmem>>) attributes {dimension_semantics = [#tpu.dimension_semantics<parallel>], iteration_bounds = array<i64: 1>, scalar_prefetch = 0 : i64, scratch_operands = 0 : i64, tpu.core_type = #tpu.core_type<tc>, window_params = [{transform_indices = @transform_0, window_bounds = array<i64: 8, 16>}, {pipeline_mode = #tpu.pipeline_mode<synchronous>, transform_indices = @transform_1, window_bounds = array<i64: 168, 128>}, {transform_indices = @transform_2, window_bounds = array<i64: 8, 128>}]} {
    %c0 = arith.constant 0 : index
    %c0_0 = arith.constant 0 : index
    %0 = vector.load %arg1[%c0, %c0_0] : memref<8x16xf32, #tpu.memory_space<vmem>>, vector<8x16xf32>
    %c0_1 = arith.constant 0 : index
    %c0_2 = arith.constant 0 : index
    %1 = vector.load %arg2[%c0_1, %c0_2] : memref<168x128xf32, #tpu.memory_space<vmem>>, vector<16x128xf32>
    %c16 = arith.constant 16 : index
    %c0_3 = arith.constant 0 : index
    %2 = vector.load %arg2[%c16, %c0_3] : memref<168x128xf32, #tpu.memory_space<vmem>>, vector<1x128xf32>
    %c24 = arith.constant 24 : index
    %c0_4 = arith.constant 0 : index
    %3 = vector.load %arg2[%c24, %c0_4] : memref<168x128xf32, #tpu.memory_space<vmem>>, vector<128x128xf32>
    %c152 = arith.constant 152 : index
    %c0_5 = arith.constant 0 : index
    %4 = vector.load %arg2[%c152, %c0_5] : memref<168x128xf32, #tpu.memory_space<vmem>>, vector<1x128xf32>
    %c160 = arith.constant 160 : index
    %c0_6 = arith.constant 0 : index
    %5 = vector.load %arg2[%c160, %c0_6] : memref<168x128xf32, #tpu.memory_space<vmem>>, vector<1x128xf32>
    %cst = arith.constant dense<0.000000e+00> : vector<8x128xf32>
    %6 = tpu.matmul %0, %1, %cst {dimension_numbers = #tpu.dot_dimension_numbers<[1], [0], [0], [1], [0, 0, 1, 1], [], []>} : vector<8x16xf32>, vector<16x128xf32>, vector<8x128xf32> -> vector<8x128xf32>
    %7 = vector.broadcast %2 : vector<1x128xf32> to vector<8x128xf32>
    %8 = arith.addf %6, %7 : vector<8x128xf32>
    %cst_7 = arith.constant 0.000000e+00 : f32
    %9 = vector.broadcast %cst_7 : f32 to vector<8x128xf32>
    %10 = arith.maximumf %8, %9 : vector<8x128xf32>
    %cst_8 = arith.constant dense<0.000000e+00> : vector<8x128xf32>
    %11 = tpu.matmul %10, %3, %cst_8 {dimension_numbers = #tpu.dot_dimension_numbers<[1], [0], [0], [1], [0, 0, 1, 1], [], []>} : vector<8x128xf32>, vector<128x128xf32>, vector<8x128xf32> -> vector<8x128xf32>
    %cst_9 = arith.constant 0.000000e+00 : f32
    %12 = vector.broadcast %cst_9 : f32 to vector<1x128xf32>
    %13 = arith.cmpf one, %5, %12 : vector<1x128xf32>
    %14 = math.exp %4 : vector<1x128xf32>
    %15 = arith.select %13, %14, %4 : vector<1x128xi1>, vector<1x128xf32>
    %16 = vector.broadcast %15 : vector<1x128xf32> to vector<8x128xf32>
    %17 = arith.addf %11, %16 : vector<8x128xf32>
    %c0_10 = arith.constant 0 : index
    %c0_11 = arith.constant 0 : index
    %18 = vector.load %arg3[%c0_10, %c0_11] : memref<8x128xf32, #tpu.memory_space<vmem>>, vector<8x128xf32>
    tpu.vector_store %arg3[%c0_10, %c0_11], %17 {strides = array<i32>} : memref<8x128xf32, #tpu.memory_space<vmem>>, vector<8x128xf32>,
    return
  }
  func.func @transform_0(%arg0: i32) -> (i32, i32) {
    %c0_i32 = arith.constant 0 : i32
    %c0_i32_0 = arith.constant 0 : i32
    return %arg0, %c0_i32 : i32, i32
  }
  func.func @transform_1(%arg0: i32) -> (i32, i32) {
    %c0_i32 = arith.constant 0 : i32
    %c0_i32_0 = arith.constant 0 : i32
    %c0_i32_1 = arith.constant 0 : i32
    return %c0_i32, %c0_i32_0 : i32, i32
  }
  func.func @transform_2(%arg0: i32) -> (i32, i32) {
    %c0_i32 = arith.constant 0 : i32
    %c0_i32_0 = arith.constant 0 : i32
    return %arg0, %c0_i32 : i32, i32
  }
}

</mosaic_0001>

<llo_original>
// kernel: tpu_custom_call.1
$region0: #{tpu_custom_call.1}
  #allocation0 [shape = 'u32[]', space=smem, size = 0x4, offset = 0x4, fixed_abs, tag = 'smem constant byte address 0x4 - core index']
  #allocation1 [shape = 'u32[144,128]{1,0:T(1,128)}', space=vmem, size = 0x12000, scoped, tag = 'internal scratch']
  %s0 = inlined_call_operand.hbm [shape: f32[8,16], index: 0, kind: input, shape index: {}]
  %s1 = inlined_call_operand.hbm [shape: f32[168,128], index: 1, kind: input, shape index: {}]
  %s2 = inlined_call_operand.hbm [shape: f32[8,128], index: 2, kind: output, shape index: {}]
  %s3 = sld [smem:[#allocation0]]
  $region26: #{tpu_custom_call.1} parent=0
    _
  %s5 = ssub.s32 1, %s3
  %s6 = scalar_select 0, %s5, %s3
  $region1: #{tpu_custom_call.1} parent=0
    #allocation2 [shape = 'u8[4096]{0}', space=vmem, size = 0x1000, scoped, tag = 'input window, operand 0, single buffered']
    #allocation3 [shape = 's32[1]{0}', space=sflag, size = 0x4, scoped, tag = 'scoped memory for tpu_custom_call.1']
    #allocation4 [shape = 's32[1]{0}', space=sflag, size = 0x4, scoped, tag = 'scoped memory for tpu_custom_call.1']
    #allocation5 [shape = 'u8[86016]{0}', space=vmem, size = 0x15000, scoped, tag = 'input window, operand 1, single buffered']
    #allocation6 [shape = 's32[1]{0}', space=sflag, size = 0x4, scoped, tag = 'scoped memory for tpu_custom_call.1']
    #allocation7 [shape = 'u8[4096]{0}', space=vmem, size = 0x1000, scoped, tag = 'output window, operand 0, single buffered']
    %7 = vsyncpa [#allocation3], 0
    %8 = vsyncpa [#allocation6], 0
    %9 = vsyncpa [#allocation4], 0
    // Predicated region
    $region2: #{tpu_custom_call.1} parent=1 // pred_check
      _
    $region3: #{tpu_custom_call.1} parent=1 // pred_check_branch
      %11 = sbr.rel (0) target = $region5
    $region4: #{tpu_custom_call.1} parent=1 // pred_region
      %s13 = ssub.s32 128, 128
      %14 = vsyncadd [#allocation3], %s13
      %s16 = sshll.u32 [#allocation2], 4
      %s17 = int_to_ptr.vmem [resolvable:$true] %s16
      %19 = dma.hbm_to_vmem [thread:$0]  %s0, 128, %s17, [#allocation3]
    $region5: #{tpu_custom_call.1} parent=1 // pred_fallthru
      _
    // Predicated region
    $region6: #{tpu_custom_call.1} parent=1 // pred_check
      _
    $region7: #{tpu_custom_call.1} parent=1 // pred_check_branch
      %21 = sbr.rel (0) target = $region9
    $region8: #{tpu_custom_call.1} parent=1 // pred_region
      %s23 = ssub.s32 2688, 2688
      %24 = vsyncadd [#allocation6], %s23
      %s25 = sshll.u32 [#allocation5], 4
      %s26 = int_to_ptr.vmem [resolvable:$true] %s25
      %31 = dma.hbm_to_vmem [thread:$0]  %s1, 2688, %s26, [#allocation6], 128, 128, 8
    $region9: #{tpu_custom_call.1} parent=1 // pred_fallthru
      _
    // Predicated region
    $region10: #{tpu_custom_call.1} parent=1 // pred_check
      _
    $region11: #{tpu_custom_call.1} parent=1 // pred_check_branch
      %33 = sbr.rel (0) target = $region13
    $region12: #{tpu_custom_call.1} parent=1 // pred_region
      %34 = dma.done [#allocation3], 128
    $region13: #{tpu_custom_call.1} parent=1 // pred_fallthru
      _
    // Predicated region
    $region14: #{tpu_custom_call.1} parent=1 // pred_check
      _
    $region15: #{tpu_custom_call.1} parent=1 // pred_check_branch
      %36 = sbr.rel (0) target = $region17
    $region16: #{tpu_custom_call.1} parent=1 // pred_region
      %37 = dma.done [#allocation6], 2688
    $region17: #{tpu_custom_call.1} parent=1 // pred_fallthru
      _
    %v38 = vld [vmem:[#allocation2] sm:$0xff]
    %v39 = vld [vmem:[#allocation5] sm:$0xff]
    %v40 = vld [vmem:[#allocation5 + $0x8] sm:$0xff]
    %v41 = vld [vmem:[#allocation5 + $0x10] sm:$0x1]
    %v42 = vld [vmem:[#allocation5 + $0x18] sm:$0xff]
    %v43 = vld [vmem:[#allocation5 + $0x20] sm:$0xff]
    %v44 = vld [vmem:[#allocation5 + $0x28] sm:$0xff]
    %v45 = vld [vmem:[#allocation5 + $0x30] sm:$0xff]
    %v46 = vld [vmem:[#allocation5 + $0x38] sm:$0xff]
    %v47 = vld [vmem:[#allocation5 + $0x40] sm:$0xff]
    %v48 = vld [vmem:[#allocation5 + $0x48] sm:$0xff]
    %v49 = vld [vmem:[#allocation5 + $0x50] sm:$0xff]
    %v50 = vld [vmem:[#allocation5 + $0x58] sm:$0xff]
    %v51 = vld [vmem:[#allocation5 + $0x60] sm:$0xff]
    %v52 = vld [vmem:[#allocation5 + $0x68] sm:$0xff]
    %v53 = vld [vmem:[#allocation5 + $0x70] sm:$0xff]
    %v54 = vld [vmem:[#allocation5 + $0x78] sm:$0xff]
    %v55 = vld [vmem:[#allocation5 + $0x80] sm:$0xff]
    %v56 = vld [vmem:[#allocation5 + $0x88] sm:$0xff]
    %v57 = vld [vmem:[#allocation5 + $0x90] sm:$0xff]
    %v58 = vld [vmem:[#allocation5 + $0x98] sm:$0x1]
    %v59 = vld [vmem:[#allocation5 + $0xa0] sm:$0x1]
    %v60 = vlaneseq
    %v61 = vshrl.u32 %v60, 7
    %v62 = vsub.s32 0, %v61
    %v63 = vrot.slane %v41, %v62
    %vm64 = vcmask 130048
    %v66 = vsel %vm64, %v38, 0
    %68 = vmatprep.subr.mxu0 0.0
    %69 = vmatpush1.msra.mxu0 %v39
    %70 = vmatprep.subr.mxu0 0.0
    %71 = vmatpush1.msra.mxu0 %v40
    %72 = vmatprep.subr.mxu0 0.0
    %73 = vmatpush1.msra.mxu0 0.0
    %74 = vmatprep.subr.mxu0 0.0
    %75 = vmatpush1.msra.mxu0 0.0
    %76 = vmatprep.subr.mxu0 0.0
    %77 = vmatpush1.msra.mxu0 0.0
    %78 = vmatprep.subr.mxu0 0.0
    %79 = vmatpush1.msra.mxu0 0.0
    %80 = vmatprep.subr.mxu0 0.0
    %81 = vmatpush1.msra.mxu0 0.0
    %82 = vmatprep.subr.mxu0 0.0
    %83 = vmatpush1.msra.mxu0 0.0
    %84 = vmatprep.subr.mxu0 0.0
    %85 = vmatpush1.msra.mxu0 0.0
    %86 = vmatprep.subr.mxu0 0.0
    %87 = vmatpush1.msra.mxu0 0.0
    %88 = vmatprep.subr.mxu0 0.0
    %89 = vmatpush1.msra.mxu0 0.0
    %90 = vmatprep.subr.mxu0 0.0
    %91 = vmatpush1.msra.mxu0 0.0
    %92 = vmatprep.subr.mxu0 0.0
    %93 = vmatpush1.msra.mxu0 0.0
    %94 = vmatprep.subr.mxu0 0.0
    %95 = vmatpush1.msra.mxu0 0.0
    %96 = vmatprep.subr.mxu0 0.0
    %97 = vmatpush1.msra.mxu0 0.0
    %98 = vmatprep.subr.mxu0 0.0
    %99 = vmatpush1.msra.mxu0 0.0
    %100 = vmatprep.subr.mxu0 0.0
    %101 = vmatpush1.msra.mxu0 0.0
    %102 = vmatprep.subr.mxu0 0.0
    %103 = vmatpush1.msra.mxu0 0.0
    %104 = vmatprep.subr.mxu0 0.0
    %105 = vmatpush1.msra.mxu0 0.0
    %106 = vmatprep.subr.mxu0 0.0
    %107 = vmatpush1.msra.mxu0 0.0
    %108 = vmatprep.subr.mxu0 0.0
    %109 = vmatpush1.msra.mxu0 0.0
    %110 = vmatprep.subr.mxu0 0.0
    %111 = vmatpush1.msra.mxu0 0.0
    %112 = vmatprep.subr.mxu0 0.0
    %113 = vmatpush1.msra.mxu0 0.0
    %114 = vmatprep.subr.mxu0 0.0
    %115 = vmatpush1.msra.mxu0 0.0
    %116 = vmatprep.subr.mxu0 0.0
    %117 = vmatpush1.msra.mxu0 0.0
    %118 = vmatprep.subr.mxu0 0.0
    %119 = vmatpush1.msra.mxu0 0.0
    %120 = vmatprep.subr.mxu0 0.0
    %121 = vmatpush1.msra.mxu0 0.0
    %122 = vmatprep.subr.mxu0 0.0
    %123 = vmatpush1.msra.mxu0 0.0
    %124 = vmatprep.subr.mxu0 0.0
    %125 = vmatpush1.msra.mxu0 0.0
    %126 = vmatprep.subr.mxu0 0.0
    %127 = vmatpush1.msra.mxu0 0.0
    %128 = vmatprep.subr.mxu0 0.0
    %129 = vmatpush1.msra.mxu0 0.0
    %130 = vmatprep.subr.mxu0 0.0
    %131 = vmatpush1.msra.mxu0 0.0
    %132 = vmatprep.mubr.f32.mxu0 0.0
    %133 = vmatmul.mubr.f32.gmra.mrb[0].mxu0 %v66
    %v134 = vpop.f32.mrb[0].mxu0
    %v135 = vadd.f32 %v63, %v134
    %v136 = vpop.f32.mrb[0].mxu0
    %137 = vdwg.mxu0
    %v138 = vmax.f32 %v135, 0.0
    %vm139 = vcmp.ne.f32.partialorder %v59, 0.0
    %v140 = vmul.f32 %v58, 1.442695
    %v141 = vpow.pop %v140
    %v142 = vsel %vm139, %v141, %v58
    %v143 = vlaneseq
    %v144 = vshrl.u32 %v143, 7
    %v145 = vsub.s32 0, %v144
    %v146 = vrot.slane %v142, %v145
    %147 = vmatprep.subr.mxu0 0.0
    %148 = vmatpush1.msra.mxu0 %v42
    %149 = vmatprep.subr.mxu0 0.0
    %150 = vmatpush1.msra.mxu0 %v43
    %151 = vmatprep.subr.mxu0 0.0
    %152 = vmatpush1.msra.mxu0 %v44
    %153 = vmatprep.subr.mxu0 0.0
    %154 = vmatpush1.msra.mxu0 %v45
    %155 = vmatprep.subr.mxu0 0.0
    %156 = vmatpush1.msra.mxu0 %v46
    %157 = vmatprep.subr.mxu0 0.0
    %158 = vmatpush1.msra.mxu0 %v47
    %159 = vmatprep.subr.mxu0 0.0
    %160 = vmatpush1.msra.mxu0 %v48
    %161 = vmatprep.subr.mxu0 0.0
    %162 = vmatpush1.msra.mxu0 %v49
    %163 = vmatprep.subr.mxu0 0.0
    %164 = vmatpush1.msra.mxu0 %v50
    %165 = vmatprep.subr.mxu0 0.0
    %166 = vmatpush1.msra.mxu0 %v51
    %167 = vmatprep.subr.mxu0 0.0
    %168 = vmatpush1.msra.mxu0 %v52
    %169 = vmatprep.subr.mxu0 0.0
    %170 = vmatpush1.msra.mxu0 %v53
    %171 = vmatprep.subr.mxu0 0.0
    %172 = vmatpush1.msra.mxu0 %v54
    %173 = vmatprep.subr.mxu0 0.0
    %174 = vmatpush1.msra.mxu0 %v55
    %175 = vmatprep.subr.mxu0 0.0
    %176 = vmatpush1.msra.mxu0 %v56
    %177 = vmatprep.subr.mxu0 0.0
    %178 = vmatpush1.msra.mxu0 %v57
    %179 = vmatprep.subr.mxu0 0.0
    %180 = vmatpush1.msra.mxu0 0.0
    %181 = vmatprep.subr.mxu0 0.0
    %182 = vmatpush1.msra.mxu0 0.0
    %183 = vmatprep.subr.mxu0 0.0
    %184 = vmatpush1.msra.mxu0 0.0
    %185 = vmatprep.subr.mxu0 0.0
    %186 = vmatpush1.msra.mxu0 0.0
    %187 = vmatprep.subr.mxu0 0.0
    %188 = vmatpush1.msra.mxu0 0.0
    %189 = vmatprep.subr.mxu0 0.0
    %190 = vmatpush1.msra.mxu0 0.0
    %191 = vmatprep.subr.mxu0 0.0
    %192 = vmatpush1.msra.mxu0 0.0
    %193 = vmatprep.subr.mxu0 0.0
    %194 = vmatpush1.msra.mxu0 0.0
    %195 = vmatprep.subr.mxu0 0.0
    %196 = vmatpush1.msra.mxu0 0.0
    %197 = vmatprep.subr.mxu0 0.0
    %198 = vmatpush1.msra.mxu0 0.0
    %199 = vmatprep.subr.mxu0 0.0
    %200 = vmatpush1.msra.mxu0 0.0
    %201 = vmatprep.subr.mxu0 0.0
    %202 = vmatpush1.msra.mxu0 0.0
    %203 = vmatprep.subr.mxu0 0.0
    %204 = vmatpush1.msra.mxu0 0.0
    %205 = vmatprep.subr.mxu0 0.0
    %206 = vmatpush1.msra.mxu0 0.0
    %207 = vmatprep.subr.mxu0 0.0
    %208 = vmatpush1.msra.mxu0 0.0
    %209 = vmatprep.subr.mxu0 0.0
    %210 = vmatpush1.msra.mxu0 0.0
    %211 = vmatprep.mubr.f32.mxu0 0.0
    %212 = vmatmul.mubr.f32.gmra.mrb[0].mxu0 %v138
    %v213 = vpop.f32.mrb[0].mxu0
    %v214 = vadd.f32 %v146, %v213
    %v215 = vpop.f32.mrb[0].mxu0
    %216 = vdwg.mxu0
    %217 = vst [vmem:[#allocation7] sm:$0xff] %v214
    // Predicated region
    $region18: #{tpu_custom_call.1} parent=1 // pred_check
      _
    $region19: #{tpu_custom_call.1} parent=1 // pred_check_branch
      %219 = sbr.rel (0) target = $region21
    $region20: #{tpu_custom_call.1} parent=1 // pred_region
      %s221 = ssub.s32 128, 128
      %222 = vsyncadd [#allocation4], %s221
      %s224 = sshll.u32 [#allocation7], 4
      %s225 = int_to_ptr.vmem [resolvable:$true] %s224
      %227 = dma.vmem_to_hbm [thread:$0]  %s225, 128, %s2, [#allocation4]
    $region21: #{tpu_custom_call.1} parent=1 // pred_fallthru
      _
    // Predicated region
    $region22: #{tpu_custom_call.1} parent=1 // pred_check
      _
    $region23: #{tpu_custom_call.1} parent=1 // pred_check_branch
      %229 = sbr.rel (0) target = $region25
    $region24: #{tpu_custom_call.1} parent=1 // pred_region
      %230 = dma.done [#allocation4], 128
    $region25: #{tpu_custom_call.1} parent=1 // pred_fallthru
      _
    %231 = vsyncpa [#allocation3], 1
    %232 = vsyncpa [#allocation6], 1
    %233 = vsyncpa [#allocation4], 1

</llo_original>
